<compile_context>
chip_gen: v7x
topology: tpu7x:2x2x1
jax: 0.10.0
libtpu: 0.0.40
codegen_flags: <defaults>
</compile_context>

<pallas_src>
import functools

import jax
import jax.numpy as jnp
from jax.experimental import pallas as pl
from jax.experimental.pallas import tpu as pltpu

# ---------------------------------------------------------------------------
# MLP dims (mirrors Network.__init__): in -> 256 -> 256 -> 256 -> 256 -> 128 -> out
HIDDENS = (256, 256, 256, 256, 128)
_LANE = 128


def _round_up(x, m):
    return ((x + m - 1) // m) * m


def _num_tensorcores_per_chip():
    """Trace-time heuristic: v7x has 2 TensorCores/chip; v5e/v6e have 1."""
    try:
        kind = jax.devices()[0].device_kind.lower()
    except Exception:
        return 1
    return 2 if "v7" in kind else 1


def _mlp_kernel(x_ref,
                w1, b1, w2, b2, w3, b3, w4, b4, w5, b5, w6, b6,
                o_ref, *, lane_pad):
    """Fused 6-layer MLP: 5x (bf16 matmul -> f32 bias + ReLU) + bf16 matmul + bias.

    All weights (bf16, ~0.6 MiB) stay resident in VMEM across the whole grid;
    the grid tiles only the batch dimension.
    """
    h = x_ref[...]                                         # f32 (tile, D_in)
    if lane_pad:
        # Zero-extend to 128 lanes in VMEM (w1 is K-padded with zeros to match).
        zeros = jnp.zeros((h.shape[0], lane_pad), dtype=h.dtype)
        h = jnp.concatenate([h, zeros], axis=-1)
    for w_ref, b_ref in ((w1, b1), (w2, b2), (w3, b3), (w4, b4), (w5, b5)):
        z = jnp.dot(h.astype(jnp.bfloat16), w_ref[...],
                    preferred_element_type=jnp.float32) + b_ref[...]
        h = jnp.maximum(z, 0.0)                            # elementwise in f32
    out = jnp.dot(h.astype(jnp.bfloat16), w6[...],
                  preferred_element_type=jnp.float32) + b6[...]
    # Store only the true output lanes (output array is unpadded in HBM).
    o_ref[...] = out[:, :o_ref.shape[1]].astype(o_ref.dtype)


def init_params(key, input_dimension, output_dimension, dtype=jnp.float32):
    """PyTorch-Linear-style init: uniform(-1/sqrt(fan_in), 1/sqrt(fan_in)).

    Weights are returned already transposed to (in, out) for the kernel.
    """
    dims = (input_dimension,) + HIDDENS + (output_dimension,)
    params = []
    for i in range(len(dims) - 1):
        fan_in, fan_out = dims[i], dims[i + 1]
        key, kw, kb = jax.random.split(key, 3)
        bound = float(fan_in) ** -0.5
        w = jax.random.uniform(kw, (fan_in, fan_out), dtype, -bound, bound)
        b = jax.random.uniform(kb, (1, fan_out), dtype, -bound, bound)
        params.append((w, b))
    return params


@functools.partial(jax.jit, static_argnames=("block_b",))
def mlp_forward(x, params, *, block_b=512):
    B, D_in = x.shape
    D_out = params[-1][0].shape[1]
    n_layers = len(params)
    num_tc = _num_tensorcores_per_chip()

    # ---- batch tile selection ------------------------------------------------
    block_b_eff = min(block_b, _round_up(B, 8))
    # Only split into multiple tiles when the chip actually has >1 TensorCore
    # (v7x); on single-TC v5e/v6e the grid is a serial loop, so one maximal
    # tile is fastest.  When splitting, keep one >=128-row tile per core.
    if num_tc > 1 and pl.cdiv(B, block_b_eff) < num_tc and B >= 128 * num_tc:
        block_b_eff = _round_up(pl.cdiv(B, num_tc), _LANE)
    grid_b = pl.cdiv(B, block_b_eff)
    B_pad = grid_b * block_b_eff

    x_p = x if B_pad == B else jnp.pad(x, ((0, B_pad - B), (0, 0)))

    # ---- feature-dim padding policy -------------------------------------------
    # Input lanes: handled *inside* the kernel (no HBM pad of x).
    D_in_p = _round_up(D_in, _LANE)
    lane_pad = D_in_p - D_in
    # Output lanes: matmul runs on the padded weight (aligned tiles) but only
    # the first D_out lanes are stored; the HBM output stays unpadded.
    D_out_p = _round_up(D_out, _LANE)

    # Flatten params into an interleaved arg list: w1, b1, ..., w6, b6.
    # Weights are cast to bf16 (MXU input dtype); biases stay f32.
    flat = []
    param_specs = []
    for li, (w, b) in enumerate(params):
        if li == 0 and lane_pad:
            w = jnp.pad(w, ((0, lane_pad), (0, 0)))
        if li == n_layers - 1 and D_out_p != D_out:
            w = jnp.pad(w, ((0, 0), (0, D_out_p - D_out)))
            b = jnp.pad(b, ((0, 0), (0, D_out_p - D_out)))
        w = w.astype(jnp.bfloat16)
        flat.extend((w, b))
        # Whole-array, grid-invariant blocks (resident in VMEM every step).
        param_specs.append(pl.BlockSpec(w.shape, lambda i: (0, 0)))
        param_specs.append(pl.BlockSpec(b.shape, lambda i: (0, 0)))

    # ---- cost hint for XLA scheduling around the custom call -------------------
    dims = [D_in_p] + list(HIDDENS) + [D_out_p]
    mm_flops = 2 * sum(dims[i] * dims[i + 1] for i in range(len(dims) - 1))
    weight_bytes = sum(int(a.size) * a.dtype.itemsize for a in flat)
    io_bytes = int(x_p.size) * x_p.dtype.itemsize + B_pad * D_out * 4
    cost = pl.CostEstimate(flops=int(B_pad * mm_flops),
                           transcendentals=0,
                           bytes_accessed=int(weight_bytes + io_bytes))

    out_p = pl.pallas_call(
        functools.partial(_mlp_kernel, lane_pad=lane_pad),
        out_shape=jax.ShapeDtypeStruct((B_pad, D_out), x.dtype),
        grid_spec=pltpu.PrefetchScalarGridSpec(
            num_scalar_prefetch=0,
            grid=(grid_b,),
            # x block's last dim equals the full array dim (legal unpadded).
            in_specs=[pl.BlockSpec((block_b_eff, D_in), lambda i: (i, 0))]
                     + param_specs,
            # Unpadded output block (last dim equals full array dim).
            out_specs=pl.BlockSpec((block_b_eff, D_out), lambda i: (i, 0)),
        ),
        compiler_params=pltpu.CompilerParams(
            dimension_semantics=("parallel",)),
        cost_estimate=cost,
    )(x_p, *flat)

    # Slice off batch padding only (no lane padding in HBM anymore).
    return out_p if B_pad == B else out_p[:B]


def mlp_reference(x, params):
    h = x
    for w, b in params[:-1]:
        h = jnp.maximum(h @ w + b, 0.0)
    w, b = params[-1]
    return h @ w + b


if __name__ == "__main__":
    # Small shapes consistent with the module: e.g. an 8-dim state, 4 actions.
    input_dimension = 8
    output_dimension = 4
    batch = 16

    key = jax.random.PRNGKey(0)
    key, kx = jax.random.split(key)
    x = jax.random.normal(kx, (batch, input_dimension), dtype=jnp.float32)
    params = init_params(key, input_dimension, output_dimension)

    out = jax.block_until_ready(mlp_forward(x, params))
    ref = mlp_reference(x, params)

    assert out.shape == (batch, output_dimension)
    # bf16 matmul inputs with f32 accumulation vs. a pure-f32 reference.
    assert jnp.allclose(out, ref, atol=2e-2, rtol=2e-2), "mismatch vs reference"

    print("KERNEL_OK")
</pallas_src>

<mosaic_0001>
module attributes {stable_mosaic.version = 11 : i64} {
  func.func @_mlp_kernel(%arg0: i32, %arg1: memref<16x8xf32, #tpu.memory_space<vmem>>, %arg2: memref<128x256xbf16, #tpu.memory_space<vmem>>, %arg3: memref<1x256xf32, #tpu.memory_space<vmem>>, %arg4: memref<256x256xbf16, #tpu.memory_space<vmem>>, %arg5: memref<1x256xf32, #tpu.memory_space<vmem>>, %arg6: memref<256x256xbf16, #tpu.memory_space<vmem>>, %arg7: memref<1x256xf32, #tpu.memory_space<vmem>>, %arg8: memref<256x256xbf16, #tpu.memory_space<vmem>>, %arg9: memref<1x256xf32, #tpu.memory_space<vmem>>, %arg10: memref<256x128xbf16, #tpu.memory_space<vmem>>, %arg11: memref<1x128xf32, #tpu.memory_space<vmem>>, %arg12: memref<128x128xbf16, #tpu.memory_space<vmem>>, %arg13: memref<1x128xf32, #tpu.memory_space<vmem>>, %arg14: memref<16x4xf32, #tpu.memory_space<vmem>>) attributes {dimension_semantics = [#tpu.dimension_semantics<parallel>], iteration_bounds = array<i64: 1>, scalar_prefetch = 0 : i64, scratch_operands = 0 : i64, tpu.core_type = #tpu.core_type<tc>, window_params = [{transform_indices = @transform_0, window_bounds = array<i64: 16, 8>}, {pipeline_mode = #tpu.pipeline_mode<synchronous>, transform_indices = @transform_1, window_bounds = array<i64: 128, 256>}, {pipeline_mode = #tpu.pipeline_mode<synchronous>, transform_indices = @transform_2, window_bounds = array<i64: 1, 256>}, {pipeline_mode = #tpu.pipeline_mode<synchronous>, transform_indices = @transform_3, window_bounds = array<i64: 256, 256>}, {pipeline_mode = #tpu.pipeline_mode<synchronous>, transform_indices = @transform_4, window_bounds = array<i64: 1, 256>}, {pipeline_mode = #tpu.pipeline_mode<synchronous>, transform_indices = @transform_5, window_bounds = array<i64: 256, 256>}, {pipeline_mode = #tpu.pipeline_mode<synchronous>, transform_indices = @transform_6, window_bounds = array<i64: 1, 256>}, {pipeline_mode = #tpu.pipeline_mode<synchronous>, transform_indices = @transform_7, window_bounds = array<i64: 256, 256>}, {pipeline_mode = #tpu.pipeline_mode<synchronous>, transform_indices = @transform_8, window_bounds = array<i64: 1, 256>}, {pipeline_mode = #tpu.pipeline_mode<synchronous>, transform_indices = @transform_9, window_bounds = array<i64: 256, 128>}, {pipeline_mode = #tpu.pipeline_mode<synchronous>, transform_indices = @transform_10, window_bounds = array<i64: 1, 128>}, {pipeline_mode = #tpu.pipeline_mode<synchronous>, transform_indices = @transform_11, window_bounds = array<i64: 128, 128>}, {pipeline_mode = #tpu.pipeline_mode<synchronous>, transform_indices = @transform_12, window_bounds = array<i64: 1, 128>}, {transform_indices = @transform_13, window_bounds = array<i64: 16, 4>}]} {
    %c0 = arith.constant 0 : index
    %c0_0 = arith.constant 0 : index
    %0 = vector.load %arg1[%c0, %c0_0] : memref<16x8xf32, #tpu.memory_space<vmem>>, vector<16x8xf32>
    %cst = arith.constant 0.000000e+00 : f32
    %1 = vector.broadcast %cst : f32 to vector<16x120xf32>
    %2 = tpu.concatenate %0, %1 in 1 : vector<16x8xf32>, vector<16x120xf32> -> vector<16x128xf32>
    %3 = arith.truncf %2 : vector<16x128xf32> to vector<16x128xbf16>
    %c0_1 = arith.constant 0 : index
    %c0_2 = arith.constant 0 : index
    %4 = vector.load %arg2[%c0_1, %c0_2] : memref<128x256xbf16, #tpu.memory_space<vmem>>, vector<128x256xbf16>
    %cst_3 = arith.constant dense<0.000000e+00> : vector<16x256xf32>
    %5 = tpu.matmul %3, %4, %cst_3 {dimension_numbers = #tpu.dot_dimension_numbers<[1], [0], [0], [1], [0, 0, 1, 1], [], []>} : vector<16x128xbf16>, vector<128x256xbf16>, vector<16x256xf32> -> vector<16x256xf32>
    %c0_4 = arith.constant 0 : index
    %c0_5 = arith.constant 0 : index
    %6 = vector.load %arg3[%c0_4, %c0_5] : memref<1x256xf32, #tpu.memory_space<vmem>>, vector<1x256xf32>
    %7 = vector.broadcast %6 : vector<1x256xf32> to vector<16x256xf32>
    %8 = arith.addf %5, %7 : vector<16x256xf32>
    %cst_6 = arith.constant 0.000000e+00 : f32
    %9 = vector.broadcast %cst_6 : f32 to vector<16x256xf32>
    %10 = arith.maximumf %8, %9 : vector<16x256xf32>
    %11 = arith.truncf %10 : vector<16x256xf32> to vector<16x256xbf16>
    %c0_7 = arith.constant 0 : index
    %c0_8 = arith.constant 0 : index
    %12 = vector.load %arg4[%c0_7, %c0_8] : memref<256x256xbf16, #tpu.memory_space<vmem>>, vector<256x256xbf16>
    %cst_9 = arith.constant dense<0.000000e+00> : vector<16x256xf32>
    %13 = tpu.matmul %11, %12, %cst_9 {dimension_numbers = #tpu.dot_dimension_numbers<[1], [0], [0], [1], [0, 0, 1, 1], [], []>} : vector<16x256xbf16>, vector<256x256xbf16>, vector<16x256xf32> -> vector<16x256xf32>
    %c0_10 = arith.constant 0 : index
    %c0_11 = arith.constant 0 : index
    %14 = vector.load %arg5[%c0_10, %c0_11] : memref<1x256xf32, #tpu.memory_space<vmem>>, vector<1x256xf32>
    %15 = vector.broadcast %14 : vector<1x256xf32> to vector<16x256xf32>
    %16 = arith.addf %13, %15 : vector<16x256xf32>
    %cst_12 = arith.constant 0.000000e+00 : f32
    %17 = vector.broadcast %cst_12 : f32 to vector<16x256xf32>
    %18 = arith.maximumf %16, %17 : vector<16x256xf32>
    %19 = arith.truncf %18 : vector<16x256xf32> to vector<16x256xbf16>
    %c0_13 = arith.constant 0 : index
    %c0_14 = arith.constant 0 : index
    %20 = vector.load %arg6[%c0_13, %c0_14] : memref<256x256xbf16, #tpu.memory_space<vmem>>, vector<256x256xbf16>
    %cst_15 = arith.constant dense<0.000000e+00> : vector<16x256xf32>
    %21 = tpu.matmul %19, %20, %cst_15 {dimension_numbers = #tpu.dot_dimension_numbers<[1], [0], [0], [1], [0, 0, 1, 1], [], []>} : vector<16x256xbf16>, vector<256x256xbf16>, vector<16x256xf32> -> vector<16x256xf32>
    %c0_16 = arith.constant 0 : index
    %c0_17 = arith.constant 0 : index
    %22 = vector.load %arg7[%c0_16, %c0_17] : memref<1x256xf32, #tpu.memory_space<vmem>>, vector<1x256xf32>
    %23 = vector.broadcast %22 : vector<1x256xf32> to vector<16x256xf32>
    %24 = arith.addf %21, %23 : vector<16x256xf32>
    %cst_18 = arith.constant 0.000000e+00 : f32
    %25 = vector.broadcast %cst_18 : f32 to vector<16x256xf32>
    %26 = arith.maximumf %24, %25 : vector<16x256xf32>
    %27 = arith.truncf %26 : vector<16x256xf32> to vector<16x256xbf16>
    %c0_19 = arith.constant 0 : index
    %c0_20 = arith.constant 0 : index
    %28 = vector.load %arg8[%c0_19, %c0_20] : memref<256x256xbf16, #tpu.memory_space<vmem>>, vector<256x256xbf16>
    %cst_21 = arith.constant dense<0.000000e+00> : vector<16x256xf32>
    %29 = tpu.matmul %27, %28, %cst_21 {dimension_numbers = #tpu.dot_dimension_numbers<[1], [0], [0], [1], [0, 0, 1, 1], [], []>} : vector<16x256xbf16>, vector<256x256xbf16>, vector<16x256xf32> -> vector<16x256xf32>
    %c0_22 = arith.constant 0 : index
    %c0_23 = arith.constant 0 : index
    %30 = vector.load %arg9[%c0_22, %c0_23] : memref<1x256xf32, #tpu.memory_space<vmem>>, vector<1x256xf32>
    %31 = vector.broadcast %30 : vector<1x256xf32> to vector<16x256xf32>
    %32 = arith.addf %29, %31 : vector<16x256xf32>
    %cst_24 = arith.constant 0.000000e+00 : f32
    %33 = vector.broadcast %cst_24 : f32 to vector<16x256xf32>
    %34 = arith.maximumf %32, %33 : vector<16x256xf32>
    %35 = arith.truncf %34 : vector<16x256xf32> to vector<16x256xbf16>
    %c0_25 = arith.constant 0 : index
    %c0_26 = arith.constant 0 : index
    %36 = vector.load %arg10[%c0_25, %c0_26] : memref<256x128xbf16, #tpu.memory_space<vmem>>, vector<256x128xbf16>
    %cst_27 = arith.constant dense<0.000000e+00> : vector<16x128xf32>
    %37 = tpu.matmul %35, %36, %cst_27 {dimension_numbers = #tpu.dot_dimension_numbers<[1], [0], [0], [1], [0, 0, 1, 1], [], []>} : vector<16x256xbf16>, vector<256x128xbf16>, vector<16x128xf32> -> vector<16x128xf32>
    %c0_28 = arith.constant 0 : index
    %c0_29 = arith.constant 0 : index
    %38 = vector.load %arg11[%c0_28, %c0_29] : memref<1x128xf32, #tpu.memory_space<vmem>>, vector<1x128xf32>
    %39 = vector.broadcast %38 : vector<1x128xf32> to vector<16x128xf32>
    %40 = arith.addf %37, %39 : vector<16x128xf32>
    %cst_30 = arith.constant 0.000000e+00 : f32
    %41 = vector.broadcast %cst_30 : f32 to vector<16x128xf32>
    %42 = arith.maximumf %40, %41 : vector<16x128xf32>
    %43 = arith.truncf %42 : vector<16x128xf32> to vector<16x128xbf16>
    %c0_31 = arith.constant 0 : index
    %c0_32 = arith.constant 0 : index
    %44 = vector.load %arg12[%c0_31, %c0_32] : memref<128x128xbf16, #tpu.memory_space<vmem>>, vector<128x128xbf16>
    %cst_33 = arith.constant dense<0.000000e+00> : vector<16x128xf32>
    %45 = tpu.matmul %43, %44, %cst_33 {dimension_numbers = #tpu.dot_dimension_numbers<[1], [0], [0], [1], [0, 0, 1, 1], [], []>} : vector<16x128xbf16>, vector<128x128xbf16>, vector<16x128xf32> -> vector<16x128xf32>
    %c0_34 = arith.constant 0 : index
    %c0_35 = arith.constant 0 : index
    %46 = vector.load %arg13[%c0_34, %c0_35] : memref<1x128xf32, #tpu.memory_space<vmem>>, vector<1x128xf32>
    %47 = vector.broadcast %46 : vector<1x128xf32> to vector<16x128xf32>
    %48 = arith.addf %45, %47 : vector<16x128xf32>
    %49 = vector.extract_strided_slice %48 {offsets = [0, 0], sizes = [16, 4], strides = [1, 1]} : vector<16x128xf32> to vector<16x4xf32>
    %c0_36 = arith.constant 0 : index
    %c0_37 = arith.constant 0 : index
    %50 = vector.load %arg14[%c0_36, %c0_37] : memref<16x4xf32, #tpu.memory_space<vmem>>, vector<16x4xf32>
    tpu.vector_store %arg14[%c0_36, %c0_37], %49 {strides = array<i32>} : memref<16x4xf32, #tpu.memory_space<vmem>>, vector<16x4xf32>,
    return
  }
  func.func @transform_0(%arg0: i32) -> (i32, i32) {
    %c0_i32 = arith.constant 0 : i32
    %c0_i32_0 = arith.constant 0 : i32
    return %arg0, %c0_i32 : i32, i32
  }
  func.func @transform_1(%arg0: i32) -> (i32, i32) {
    %c0_i32 = arith.constant 0 : i32
    %c0_i32_0 = arith.constant 0 : i32
    %c0_i32_1 = arith.constant 0 : i32
    return %c0_i32, %c0_i32_0 : i32, i32
  }
  func.func @transform_2(%arg0: i32) -> (i32, i32) {
    %c0_i32 = arith.constant 0 : i32
    %c0_i32_0 = arith.constant 0 : i32
    %c0_i32_1 = arith.constant 0 : i32
    return %c0_i32, %c0_i32_0 : i32, i32
  }
  func.func @transform_3(%arg0: i32) -> (i32, i32) {
    %c0_i32 = arith.constant 0 : i32
    %c0_i32_0 = arith.constant 0 : i32
    %c0_i32_1 = arith.constant 0 : i32
    return %c0_i32, %c0_i32_0 : i32, i32
  }
  func.func @transform_4(%arg0: i32) -> (i32, i32) {
    %c0_i32 = arith.constant 0 : i32
    %c0_i32_0 = arith.constant 0 : i32
    %c0_i32_1 = arith.constant 0 : i32
    return %c0_i32, %c0_i32_0 : i32, i32
  }
  func.func @transform_5(%arg0: i32) -> (i32, i32) {
    %c0_i32 = arith.constant 0 : i32
    %c0_i32_0 = arith.constant 0 : i32
    %c0_i32_1 = arith.constant 0 : i32
    return %c0_i32, %c0_i32_0 : i32, i32
  }
  func.func @transform_6(%arg0: i32) -> (i32, i32) {
    %c0_i32 = arith.constant 0 : i32
    %c0_i32_0 = arith.constant 0 : i32
    %c0_i32_1 = arith.constant 0 : i32
    return %c0_i32, %c0_i32_0 : i32, i32
  }
  func.func @transform_7(%arg0: i32) -> (i32, i32) {
    %c0_i32 = arith.constant 0 : i32
    %c0_i32_0 = arith.constant 0 : i32
    %c0_i32_1 = arith.constant 0 : i32
    return %c0_i32, %c0_i32_0 : i32, i32
  }
  func.func @transform_8(%arg0: i32) -> (i32, i32) {
    %c0_i32 = arith.constant 0 : i32
    %c0_i32_0 = arith.constant 0 : i32
    %c0_i32_1 = arith.constant 0 : i32
    return %c0_i32, %c0_i32_0 : i32, i32
  }
  func.func @transform_9(%arg0: i32) -> (i32, i32) {
    %c0_i32 = arith.constant 0 : i32
    %c0_i32_0 = arith.constant 0 : i32
    %c0_i32_1 = arith.constant 0 : i32
    return %c0_i32, %c0_i32_0 : i32, i32
  }
  func.func @transform_10(%arg0: i32) -> (i32, i32) {
    %c0_i32 = arith.constant 0 : i32
    %c0_i32_0 = arith.constant 0 : i32
    %c0_i32_1 = arith.constant 0 : i32
    return %c0_i32, %c0_i32_0 : i32, i32
  }
  func.func @transform_11(%arg0: i32) -> (i32, i32) {
    %c0_i32 = arith.constant 0 : i32
    %c0_i32_0 = arith.constant 0 : i32
    %c0_i32_1 = arith.constant 0 : i32
    return %c0_i32, %c0_i32_0 : i32, i32
  }
  func.func @transform_12(%arg0: i32) -> (i32, i32) {
    %c0_i32 = arith.constant 0 : i32
    %c0_i32_0 = arith.constant 0 : i32
    %c0_i32_1 = arith.constant 0 : i32
    return %c0_i32, %c0_i32_0 : i32, i32
  }
  func.func @transform_13(%arg0: i32) -> (i32, i32) {
    %c0_i32 = arith.constant 0 : i32
    %c0_i32_0 = arith.constant 0 : i32
    return %arg0, %c0_i32 : i32, i32
  }
}

</mosaic_0001>

<llo_original>
// kernel: mlp_forward.1
$region0: #{mlp_forward.1}
  #allocation0 [shape = 'u32[]', space=smem, size = 0x4, offset = 0x4, fixed_abs, tag = 'smem constant byte address 0x4 - core index']
  #allocation1 [shape = 'u32[144,128]{1,0:T(1,128)}', space=vmem, size = 0x12000, scoped, tag = 'internal scratch']
  %s0 = inlined_call_operand.vmem [shape: f32[16,8], index: 0, kind: input, shape index: {}]
  %s1 = inlined_call_operand.vmem [shape: bf16[128,256], index: 1, kind: input, shape index: {}]
  %s2 = inlined_call_operand.vmem [shape: f32[1,256], index: 2, kind: input, shape index: {}]
  %s3 = inlined_call_operand.vmem [shape: bf16[256,256], index: 3, kind: input, shape index: {}]
  %s4 = inlined_call_operand.vmem [shape: f32[1,256], index: 4, kind: input, shape index: {}]
  %s5 = inlined_call_operand.vmem [shape: bf16[256,256], index: 5, kind: input, shape index: {}]
  %s6 = inlined_call_operand.vmem [shape: f32[1,256], index: 6, kind: input, shape index: {}]
  %s7 = inlined_call_operand.vmem [shape: bf16[256,256], index: 7, kind: input, shape index: {}]
  %s8 = inlined_call_operand.vmem [shape: f32[1,256], index: 8, kind: input, shape index: {}]
  %s9 = inlined_call_operand.vmem [shape: bf16[256,128], index: 9, kind: input, shape index: {}]
  %s10 = inlined_call_operand.vmem [shape: f32[1,128], index: 10, kind: input, shape index: {}]
  %s11 = inlined_call_operand.vmem [shape: bf16[128,128], index: 11, kind: input, shape index: {}]
  %s12 = inlined_call_operand.vmem [shape: f32[1,128], index: 12, kind: input, shape index: {}]
  %s13 = inlined_call_operand.vmem [shape: f32[16,4], index: 13, kind: output, shape index: {}]
  %s14 = sld [smem:[#allocation0]]
  $region62: #{mlp_forward.1} parent=0
    _
  %s16 = ssub.s32 1, %s14
  %s17 = scalar_select 0, %s16, %s14
  // Predicated region
  $region2: #{mlp_forward.1} parent=0 // pred_check
    _
  $region3: #{mlp_forward.1} parent=0 // pred_check_branch
    %19 = sbr.rel (0) target = $region5
  $region4: #{mlp_forward.1} parent=0 // pred_region
    _
  $region5: #{mlp_forward.1} parent=0 // pred_fallthru
    _
  // Predicated region
  $region6: #{mlp_forward.1} parent=0 // pred_check
    _
  $region7: #{mlp_forward.1} parent=0 // pred_check_branch
    %21 = sbr.rel (0) target = $region9
  $region8: #{mlp_forward.1} parent=0 // pred_region
    _
  $region9: #{mlp_forward.1} parent=0 // pred_fallthru
    _
  // Predicated region
  $region10: #{mlp_forward.1} parent=0 // pred_check
    _
  $region11: #{mlp_forward.1} parent=0 // pred_check_branch
    %23 = sbr.rel (0) target = $region13
  $region12: #{mlp_forward.1} parent=0 // pred_region
    _
  $region13: #{mlp_forward.1} parent=0 // pred_fallthru
    _
  // Predicated region
  $region14: #{mlp_forward.1} parent=0 // pred_check
    _
  $region15: #{mlp_forward.1} parent=0 // pred_check_branch
    %25 = sbr.rel (0) target = $region17
  $region16: #{mlp_forward.1} parent=0 // pred_region
    _
  $region17: #{mlp_forward.1} parent=0 // pred_fallthru
    _
  // Predicated region
  $region18: #{mlp_forward.1} parent=0 // pred_check
    _
  $region19: #{mlp_forward.1} parent=0 // pred_check_branch
    %27 = sbr.rel (0) target = $region21
  $region20: #{mlp_forward.1} parent=0 // pred_region
    _
  $region21: #{mlp_forward.1} parent=0 // pred_fallthru
    _
  // Predicated region
  $region22: #{mlp_forward.1} parent=0 // pred_check
    _
  $region23: #{mlp_forward.1} parent=0 // pred_check_branch
    %29 = sbr.rel (0) target = $region25
  $region24: #{mlp_forward.1} parent=0 // pred_region
    _
  $region25: #{mlp_forward.1} parent=0 // pred_fallthru
    _
  // Predicated region
  $region26: #{mlp_forward.1} parent=0 // pred_check
    _
  $region27: #{mlp_forward.1} parent=0 // pred_check_branch
    %31 = sbr.rel (0) target = $region29
  $region28: #{mlp_forward.1} parent=0 // pred_region
    _
  $region29: #{mlp_forward.1} parent=0 // pred_fallthru
    _
  // Predicated region
  $region30: #{mlp_forward.1} parent=0 // pred_check
    _
  $region31: #{mlp_forward.1} parent=0 // pred_check_branch
    %33 = sbr.rel (0) target = $region33
  $region32: #{mlp_forward.1} parent=0 // pred_region
    _
  $region33: #{mlp_forward.1} parent=0 // pred_fallthru
    _
  // Predicated region
  $region34: #{mlp_forward.1} parent=0 // pred_check
    _
  $region35: #{mlp_forward.1} parent=0 // pred_check_branch
    %35 = sbr.rel (0) target = $region37
  $region36: #{mlp_forward.1} parent=0 // pred_region
    _
  $region37: #{mlp_forward.1} parent=0 // pred_fallthru
    _
  // Predicated region
  $region38: #{mlp_forward.1} parent=0 // pred_check
    _
  $region39: #{mlp_forward.1} parent=0 // pred_check_branch
    %37 = sbr.rel (0) target = $region41
  $region40: #{mlp_forward.1} parent=0 // pred_region
    _
  $region41: #{mlp_forward.1} parent=0 // pred_fallthru
    _
  // Predicated region
  $region42: #{mlp_forward.1} parent=0 // pred_check
    _
  $region43: #{mlp_forward.1} parent=0 // pred_check_branch
    %39 = sbr.rel (0) target = $region45
  $region44: #{mlp_forward.1} parent=0 // pred_region
    _
  $region45: #{mlp_forward.1} parent=0 // pred_fallthru
    _
  // Predicated region
  $region46: #{mlp_forward.1} parent=0 // pred_check
    _
  $region47: #{mlp_forward.1} parent=0 // pred_check_branch
    %41 = sbr.rel (0) target = $region49
  $region48: #{mlp_forward.1} parent=0 // pred_region
    _
  $region49: #{mlp_forward.1} parent=0 // pred_fallthru
    _
  // Predicated region
  $region50: #{mlp_forward.1} parent=0 // pred_check
    _
  $region51: #{mlp_forward.1} parent=0 // pred_check_branch
    %43 = sbr.rel (0) target = $region53
  $region52: #{mlp_forward.1} parent=0 // pred_region
    _
  $region53: #{mlp_forward.1} parent=0 // pred_fallthru
    _
  %v45 = vld [vmem:[%s0] sm:$0xff]
  %v46 = vld [vmem:[%s0 + $0x8] sm:$0xff]
  %vm47 = vcmask 64512
  %v48 = vsel %vm47, %v45, 0.0
  %v49 = vsel %vm47, %v46, 0.0
  %v50 = vpack.c.bf16 %v49, %v48
  %v51 = vld [vmem:[%s1] sm:$0xff]
  %v52 = vld [vmem:[%s1 + $0x8] sm:$0xff]
  %v53 = vld [vmem:[%s1 + $0x10] sm:$0xff]
  %v54 = vld [vmem:[%s1 + $0x18] sm:$0xff]
  %v55 = vld [vmem:[%s1 + $0x20] sm:$0xff]
  %v56 = vld [vmem:[%s1 + $0x28] sm:$0xff]
  %v57 = vld [vmem:[%s1 + $0x30] sm:$0xff]
  %v58 = vld [vmem:[%s1 + $0x38] sm:$0xff]
  %v59 = vld [vmem:[%s1 + $0x40] sm:$0xff]
  %v60 = vld [vmem:[%s1 + $0x48] sm:$0xff]
  %v61 = vld [vmem:[%s1 + $0x50] sm:$0xff]
  %v62 = vld [vmem:[%s1 + $0x58] sm:$0xff]
  %v63 = vld [vmem:[%s1 + $0x60] sm:$0xff]
  %v64 = vld [vmem:[%s1 + $0x68] sm:$0xff]
  %v65 = vld [vmem:[%s1 + $0x70] sm:$0xff]
  %v66 = vld [vmem:[%s1 + $0x78] sm:$0xff]
  %v67 = vld [vmem:[%s2] sm:$0x3]
  %v69 = vlaneseq
  %v70 = vshrl.u32 %v69, 7
  %v71 = vsub.s32 0, %v70
  %v72 = vrot.slane %v67, %v71
  %v73 = vlaneseq
  %v74 = vshrl.u32 %v73, 7
  %v75 = vsub.s32 1, %v74
  %v76 = vrot.slane %v67, %v75
  %v95 = vunpack.c.l.b16 %v51
  %v96 = vunpack.c.h.b16 %v51
  %v97 = vunpack.c.l.b16 %v52
  %v98 = vunpack.c.h.b16 %v52
  %v99 = vunpack.c.l.b16 %v53
  %v100 = vunpack.c.h.b16 %v53
  %v101 = vunpack.c.l.b16 %v54
  %v102 = vunpack.c.h.b16 %v54
  %v103 = vunpack.c.l.b16 %v55
  %v104 = vunpack.c.h.b16 %v55
  %v105 = vunpack.c.l.b16 %v56
  %v106 = vunpack.c.h.b16 %v56
  %v107 = vunpack.c.l.b16 %v57
  %v108 = vunpack.c.h.b16 %v57
  %v109 = vunpack.c.l.b16 %v58
  %v110 = vunpack.c.h.b16 %v58
  %v111 = vunpack.c.l.b16 %v59
  %v112 = vunpack.c.h.b16 %v59
  %v113 = vunpack.c.l.b16 %v60
  %v114 = vunpack.c.h.b16 %v60
  %v115 = vunpack.c.l.b16 %v61
  %v116 = vunpack.c.h.b16 %v61
  %v117 = vunpack.c.l.b16 %v62
  %v118 = vunpack.c.h.b16 %v62
  %v119 = vunpack.c.l.b16 %v63
  %v120 = vunpack.c.h.b16 %v63
  %v121 = vunpack.c.l.b16 %v64
  %v122 = vunpack.c.h.b16 %v64
  %v123 = vunpack.c.l.b16 %v65
  %v124 = vunpack.c.h.b16 %v65
  %v125 = vunpack.c.l.b16 %v66
  %v126 = vunpack.c.h.b16 %v66
  %v127 = vpack.c.b16 %v97, %v95
  %v128 = vpack.c.b16 %v98, %v96
  %v129 = vpack.c.b16 %v101, %v99
  %v130 = vpack.c.b16 %v102, %v100
  %v131 = vpack.c.b16 %v105, %v103
  %v132 = vpack.c.b16 %v106, %v104
  %v133 = vpack.c.b16 %v109, %v107
  %v134 = vpack.c.b16 %v110, %v108
  %v135 = vpack.c.b16 %v113, %v111
  %v136 = vpack.c.b16 %v114, %v112
  %v137 = vpack.c.b16 %v117, %v115
  %v138 = vpack.c.b16 %v118, %v116
  %v139 = vpack.c.b16 %v121, %v119
  %v140 = vpack.c.b16 %v122, %v120
  %v141 = vpack.c.b16 %v125, %v123
  %v142 = vpack.c.b16 %v126, %v124
  %159 = vmatprep.subr.bf16.mxu0 %v128
  %160 = vmatpush1.bf16.msra.mxu0 %v127
  %161 = vmatprep.subr.bf16.mxu0 %v130
  %162 = vmatpush1.bf16.msra.mxu0 %v129
  %163 = vmatprep.subr.bf16.mxu0 %v132
  %164 = vmatpush1.bf16.msra.mxu0 %v131
  %165 = vmatprep.subr.bf16.mxu0 %v134
  %166 = vmatpush1.bf16.msra.mxu0 %v133
  %167 = vmatprep.subr.bf16.mxu0 %v136
  %168 = vmatpush1.bf16.msra.mxu0 %v135
  %169 = vmatprep.subr.bf16.mxu0 %v138
  %170 = vmatpush1.bf16.msra.mxu0 %v137
  %171 = vmatprep.subr.bf16.mxu0 %v140
  %172 = vmatpush1.bf16.msra.mxu0 %v139
  %173 = vmatprep.subr.bf16.mxu0 %v142
  %174 = vmatpush1.bf16.msra.mxu0 %v141
  %175 = vmatprep.subr.bf16.mxu0 0
  %176 = vmatpush1.bf16.msra.mxu0 0
  %177 = vmatprep.subr.bf16.mxu0 0
  %178 = vmatpush1.bf16.msra.mxu0 0
  %179 = vmatprep.subr.bf16.mxu0 0
  %180 = vmatpush1.bf16.msra.mxu0 0
  %181 = vmatprep.subr.bf16.mxu0 0
  %182 = vmatpush1.bf16.msra.mxu0 0
  %183 = vmatprep.subr.bf16.mxu0 0
  %184 = vmatpush1.bf16.msra.mxu0 0
  %185 = vmatprep.subr.bf16.mxu0 0
  %186 = vmatpush1.bf16.msra.mxu0 0
  %187 = vmatprep.subr.bf16.mxu0 0
  %188 = vmatpush1.bf16.msra.mxu0 0
  %189 = vmatprep.subr.bf16.mxu0 0
  %190 = vmatpush1.bf16.msra.mxu0 0
  %191 = vmatprep.mubr.bf16.mxu0 0
  %192 = vmatmul.mubr.bf16.gmra.mrb[0].mxu0 %v50
  %v193 = vpop.f32.mrb[0].mxu0
  %v194 = vadd.f32 %v72, %v193
  %v195 = vpop.f32.mrb[0].mxu0
  %v196 = vadd.f32 %v76, %v195
  %v197 = vpop.f32.mrb[0].mxu0
  %v198 = vadd.f32 %v72, %v197
  %v199 = vpop.f32.mrb[0].mxu0
  %v200 = vadd.f32 %v76, %v199
  %201 = vdwg.mxu0
  %v202 = vmax.f32 %v194, 0.0
  %v203 = vmax.f32 %v196, 0.0
  %v204 = vmax.f32 %v198, 0.0
  %v205 = vmax.f32 %v200, 0.0
  %v206 = vpack.c.bf16 %v204, %v202
  %v207 = vpack.c.bf16 %v205, %v203
  %v208 = vld [vmem:[%s3] sm:$0xff]
  %v209 = vld [vmem:[%s3 + $0x8] sm:$0xff]
  %v210 = vld [vmem:[%s3 + $0x10] sm:$0xff]
  %v211 = vld [vmem:[%s3 + $0x18] sm:$0xff]
  %v212 = vld [vmem:[%s3 + $0x20] sm:$0xff]
  %v213 = vld [vmem:[%s3 + $0x28] sm:$0xff]
  %v214 = vld [vmem:[%s3 + $0x30] sm:$0xff]
  %v215 = vld [vmem:[%s3 + $0x38] sm:$0xff]
  %v216 = vld [vmem:[%s3 + $0x40] sm:$0xff]
  %v217 = vld [vmem:[%s3 + $0x48] sm:$0xff]
  %v218 = vld [vmem:[%s3 + $0x50] sm:$0xff]
  %v219 = vld [vmem:[%s3 + $0x58] sm:$0xff]
  %v220 = vld [vmem:[%s3 + $0x60] sm:$0xff]
  %v221 = vld [vmem:[%s3 + $0x68] sm:$0xff]
  %v222 = vld [vmem:[%s3 + $0x70] sm:$0xff]
  %v223 = vld [vmem:[%s3 + $0x78] sm:$0xff]
  %v224 = vld [vmem:[%s3 + $0x80] sm:$0xff]
  %v225 = vld [vmem:[%s3 + $0x88] sm:$0xff]
  %v226 = vld [vmem:[%s3 + $0x90] sm:$0xff]
  %v227 = vld [vmem:[%s3 + $0x98] sm:$0xff]
  %v228 = vld [vmem:[%s3 + $0xa0] sm:$0xff]
  %v229 = vld [vmem:[%s3 + $0xa8] sm:$0xff]
  %v230 = vld [vmem:[%s3 + $0xb0] sm:$0xff]
  %v231 = vld [vmem:[%s3 + $0xb8] sm:$0xff]
  %v232 = vld [vmem:[%s3 + $0xc0] sm:$0xff]
  %v233 = vld [vmem:[%s3 + $0xc8] sm:$0xff]
  %v234 = vld [vmem:[%s3 + $0xd0] sm:$0xff]
  %v235 = vld [vmem:[%s3 + $0xd8] sm:$0xff]
  %v236 = vld [vmem:[%s3 + $0xe0] sm:$0xff]
  %v237 = vld [vmem:[%s3 + $0xe8] sm:$0xff]
  %v238 = vld [vmem:[%s3 + $0xf0] sm:$0xff]
  %v239 = vld [vmem:[%s3 + $0xf8] sm:$0xff]
  %v240 = vld [vmem:[%s4] sm:$0x3]
  %v242 = vlaneseq
  %v243 = vshrl.u32 %v242, 7
  %v244 = vsub.s32 0, %v243
  %v245 = vrot.slane %v240, %v244
  %v246 = vlaneseq
  %v247 = vshrl.u32 %v246, 7
  %v248 = vsub.s32 1, %v247
  %v249 = vrot.slane %v240, %v248
  %v284 = vunpack.c.l.b16 %v208
  %v285 = vunpack.c.h.b16 %v208
  %v286 = vunpack.c.l.b16 %v209
  %v287 = vunpack.c.h.b16 %v209
  %v288 = vunpack.c.l.b16 %v210
  %v289 = vunpack.c.h.b16 %v210
  %v290 = vunpack.c.l.b16 %v211
  %v291 = vunpack.c.h.b16 %v211
  %v292 = vunpack.c.l.b16 %v212
  %v293 = vunpack.c.h.b16 %v212
  %v294 = vunpack.c.l.b16 %v213
  %v295 = vunpack.c.h.b16 %v213
  %v296 = vunpack.c.l.b16 %v214
  %v297 = vunpack.c.h.b16 %v214
  %v298 = vunpack.c.l.b16 %v215
  %v299 = vunpack.c.h.b16 %v215
  %v300 = vunpack.c.l.b16 %v216
  %v301 = vunpack.c.h.b16 %v216
  %v302 = vunpack.c.l.b16 %v217
  %v303 = vunpack.c.h.b16 %v217
  %v304 = vunpack.c.l.b16 %v218
  %v305 = vunpack.c.h.b16 %v218
  %v306 = vunpack.c.l.b16 %v219
  %v307 = vunpack.c.h.b16 %v219
  %v308 = vunpack.c.l.b16 %v220
  %v309 = vunpack.c.h.b16 %v220
  %v310 = vunpack.c.l.b16 %v221
  %v311 = vunpack.c.h.b16 %v221
  %v312 = vunpack.c.l.b16 %v222
  %v313 = vunpack.c.h.b16 %v222
  %v314 = vunpack.c.l.b16 %v223
  %v315 = vunpack.c.h.b16 %v223
  %v316 = vunpack.c.l.b16 %v224
  %v317 = vunpack.c.h.b16 %v224
  %v318 = vunpack.c.l.b16 %v225
  %v319 = vunpack.c.h.b16 %v225
  %v320 = vunpack.c.l.b16 %v226
  %v321 = vunpack.c.h.b16 %v226
  %v322 = vunpack.c.l.b16 %v227
  %v323 = vunpack.c.h.b16 %v227
  %v324 = vunpack.c.l.b16 %v228
  %v325 = vunpack.c.h.b16 %v228
  %v326 = vunpack.c.l.b16 %v229
  %v327 = vunpack.c.h.b16 %v229
  %v328 = vunpack.c.l.b16 %v230
  %v329 = vunpack.c.h.b16 %v230
  %v330 = vunpack.c.l.b16 %v231
  %v331 = vunpack.c.h.b16 %v231
  %v332 = vunpack.c.l.b16 %v232
  %v333 = vunpack.c.h.b16 %v232
  %v334 = vunpack.c.l.b16 %v233
  %v335 = vunpack.c.h.b16 %v233
  %v336 = vunpack.c.l.b16 %v234
  %v337 = vunpack.c.h.b16 %v234
  %v338 = vunpack.c.l.b16 %v235
  %v339 = vunpack.c.h.b16 %v235
  %v340 = vunpack.c.l.b16 %v236
  %v341 = vunpack.c.h.b16 %v236
  %v342 = vunpack.c.l.b16 %v237
  %v343 = vunpack.c.h.b16 %v237
  %v344 = vunpack.c.l.b16 %v238
  %v345 = vunpack.c.h.b16 %v238
  %v346 = vunpack.c.l.b16 %v239
  %v347 = vunpack.c.h.b16 %v239
  %v348 = vpack.c.b16 %v286, %v284
  %v349 = vpack.c.b16 %v287, %v285
  %v350 = vpack.c.b16 %v290, %v288
  %v351 = vpack.c.b16 %v291, %v289
  %v352 = vpack.c.b16 %v294, %v292
  %v353 = vpack.c.b16 %v295, %v293
  %v354 = vpack.c.b16 %v298, %v296
  %v355 = vpack.c.b16 %v299, %v297
  %v356 = vpack.c.b16 %v302, %v300
  %v357 = vpack.c.b16 %v303, %v301
  %v358 = vpack.c.b16 %v306, %v304
  %v359 = vpack.c.b16 %v307, %v305
  %v360 = vpack.c.b16 %v310, %v308
  %v361 = vpack.c.b16 %v311, %v309
  %v362 = vpack.c.b16 %v314, %v312
  %v363 = vpack.c.b16 %v315, %v313
  %v364 = vpack.c.b16 %v318, %v316
  %v365 = vpack.c.b16 %v319, %v317
  %v366 = vpack.c.b16 %v322, %v320
  %v367 = vpack.c.b16 %v323, %v321
  %v368 = vpack.c.b16 %v326, %v324
  %v369 = vpack.c.b16 %v327, %v325
  %v370 = vpack.c.b16 %v330, %v328
  %v371 = vpack.c.b16 %v331, %v329
  %v372 = vpack.c.b16 %v334, %v332
  %v373 = vpack.c.b16 %v335, %v333
  %v374 = vpack.c.b16 %v338, %v336
  %v375 = vpack.c.b16 %v339, %v337
  %v376 = vpack.c.b16 %v342, %v340
  %v377 = vpack.c.b16 %v343, %v341
  %v378 = vpack.c.b16 %v346, %v344
  %v379 = vpack.c.b16 %v347, %v345
  %412 = vmatprep.subr.bf16.mxu0 %v349
  %413 = vmatpush1.bf16.msra.mxu0 %v348
  %414 = vmatprep.subr.bf16.mxu0 %v351
  %415 = vmatpush1.bf16.msra.mxu0 %v350
  %416 = vmatprep.subr.bf16.mxu0 %v353
  %417 = vmatpush1.bf16.msra.mxu0 %v352
  %418 = vmatprep.subr.bf16.mxu0 %v355
  %419 = vmatpush1.bf16.msra.mxu0 %v354
  %420 = vmatprep.subr.bf16.mxu0 %v357
  %421 = vmatpush1.bf16.msra.mxu0 %v356
  %422 = vmatprep.subr.bf16.mxu0 %v359
  %423 = vmatpush1.bf16.msra.mxu0 %v358
  %424 = vmatprep.subr.bf16.mxu0 %v361
  %425 = vmatpush1.bf16.msra.mxu0 %v360
  %426 = vmatprep.subr.bf16.mxu0 %v363
  %427 = vmatpush1.bf16.msra.mxu0 %v362
  %428 = vmatprep.subr.bf16.mxu0 %v365
  %429 = vmatpush1.bf16.msra.mxu0 %v364
  %430 = vmatprep.subr.bf16.mxu0 %v367
  %431 = vmatpush1.bf16.msra.mxu0 %v366
  %432 = vmatprep.subr.bf16.mxu0 %v369
  %433 = vmatpush1.bf16.msra.mxu0 %v368
  %434 = vmatprep.subr.bf16.mxu0 %v371
  %435 = vmatpush1.bf16.msra.mxu0 %v370
  %436 = vmatprep.subr.bf16.mxu0 %v373
  %437 = vmatpush1.bf16.msra.mxu0 %v372
  %438 = vmatprep.subr.bf16.mxu0 %v375
  %439 = vmatpush1.bf16.msra.mxu0 %v374
  %440 = vmatprep.subr.bf16.mxu0 %v377
  %441 = vmatpush1.bf16.msra.mxu0 %v376
  %442 = vmatprep.subr.bf16.mxu0 %v379
  %443 = vmatpush1.bf16.msra.mxu0 %v378
  %444 = vmatprep.mubr.bf16.mxu0 %v207
  %445 = vmatmul.mubr.bf16.gmra.mrb[0].mxu0 %v206
  %v446 = vpop.f32.mrb[0].mxu0
  %v447 = vadd.f32 %v245, %v446
  %v448 = vpop.f32.mrb[0].mxu0
  %v449 = vadd.f32 %v249, %v448
  %v450 = vpop.f32.mrb[0].mxu0
  %v451 = vadd.f32 %v245, %v450
  %v452 = vpop.f32.mrb[0].mxu0
  %v453 = vadd.f32 %v249, %v452
  %454 = vdwg.mxu0
  %v455 = vmax.f32 %v447, 0.0
  %v456 = vmax.f32 %v449, 0.0
  %v457 = vmax.f32 %v451, 0.0
  %v458 = vmax.f32 %v453, 0.0
  %v459 = vpack.c.bf16 %v457, %v455
  %v460 = vpack.c.bf16 %v458, %v456
  %v461 = vld [vmem:[%s5] sm:$0xff]
  %v462 = vld [vmem:[%s5 + $0x8] sm:$0xff]
  %v463 = vld [vmem:[%s5 + $0x10] sm:$0xff]
  %v464 = vld [vmem:[%s5 + $0x18] sm:$0xff]
  %v465 = vld [vmem:[%s5 + $0x20] sm:$0xff]
  %v466 = vld [vmem:[%s5 + $0x28] sm:$0xff]
  %v467 = vld [vmem:[%s5 + $0x30] sm:$0xff]
  %v468 = vld [vmem:[%s5 + $0x38] sm:$0xff]
  %v469 = vld [vmem:[%s5 + $0x40] sm:$0xff]
  %v470 = vld [vmem:[%s5 + $0x48] sm:$0xff]
  %v471 = vld [vmem:[%s5 + $0x50] sm:$0xff]
  %v472 = vld [vmem:[%s5 + $0x58] sm:$0xff]
  %v473 = vld [vmem:[%s5 + $0x60] sm:$0xff]
  %v474 = vld [vmem:[%s5 + $0x68] sm:$0xff]
  %v475 = vld [vmem:[%s5 + $0x70] sm:$0xff]
  %v476 = vld [vmem:[%s5 + $0x78] sm:$0xff]
  %v477 = vld [vmem:[%s5 + $0x80] sm:$0xff]
  %v478 = vld [vmem:[%s5 + $0x88] sm:$0xff]
  %v479 = vld [vmem:[%s5 + $0x90] sm:$0xff]
  %v480 = vld [vmem:[%s5 + $0x98] sm:$0xff]
  %v481 = vld [vmem:[%s5 + $0xa0] sm:$0xff]
  %v482 = vld [vmem:[%s5 + $0xa8] sm:$0xff]
  %v483 = vld [vmem:[%s5 + $0xb0] sm:$0xff]
  %v484 = vld [vmem:[%s5 + $0xb8] sm:$0xff]
  %v485 = vld [vmem:[%s5 + $0xc0] sm:$0xff]
  %v486 = vld [vmem:[%s5 + $0xc8] sm:$0xff]
  %v487 = vld [vmem:[%s5 + $0xd0] sm:$0xff]
  %v488 = vld [vmem:[%s5 + $0xd8] sm:$0xff]
  %v489 = vld [vmem:[%s5 + $0xe0] sm:$0xff]
  %v490 = vld [vmem:[%s5 + $0xe8] sm:$0xff]
  %v491 = vld [vmem:[%s5 + $0xf0] sm:$0xff]
  %v492 = vld [vmem:[%s5 + $0xf8] sm:$0xff]
  %v493 = vld [vmem:[%s6] sm:$0x3]
  %v495 = vlaneseq
  %v496 = vshrl.u32 %v495, 7
  %v497 = vsub.s32 0, %v496
  %v498 = vrot.slane %v493, %v497
  %v499 = vlaneseq
  %v500 = vshrl.u32 %v499, 7
  %v501 = vsub.s32 1, %v500
  %v502 = vrot.slane %v493, %v501
  %v537 = vunpack.c.l.b16 %v461
  %v538 = vunpack.c.h.b16 %v461
  %v539 = vunpack.c.l.b16 %v462
  %v540 = vunpack.c.h.b16 %v462
  %v541 = vunpack.c.l.b16 %v463
  %v542 = vunpack.c.h.b16 %v463
  %v543 = vunpack.c.l.b16 %v464
  %v544 = vunpack.c.h.b16 %v464
  %v545 = vunpack.c.l.b16 %v465
  %v546 = vunpack.c.h.b16 %v465
  %v547 = vunpack.c.l.b16 %v466
  %v548 = vunpack.c.h.b16 %v466
  %v549 = vunpack.c.l.b16 %v467
  %v550 = vunpack.c.h.b16 %v467
  %v551 = vunpack.c.l.b16 %v468
  %v552 = vunpack.c.h.b16 %v468
  %v553 = vunpack.c.l.b16 %v469
  %v554 = vunpack.c.h.b16 %v469
  %v555 = vunpack.c.l.b16 %v470
  %v556 = vunpack.c.h.b16 %v470
  %v557 = vunpack.c.l.b16 %v471
  %v558 = vunpack.c.h.b16 %v471
  %v559 = vunpack.c.l.b16 %v472
  %v560 = vunpack.c.h.b16 %v472
  %v561 = vunpack.c.l.b16 %v473
  %v562 = vunpack.c.h.b16 %v473
  %v563 = vunpack.c.l.b16 %v474
  %v564 = vunpack.c.h.b16 %v474
  %v565 = vunpack.c.l.b16 %v475
  %v566 = vunpack.c.h.b16 %v475
  %v567 = vunpack.c.l.b16 %v476
  %v568 = vunpack.c.h.b16 %v476
  %v569 = vunpack.c.l.b16 %v477
  %v570 = vunpack.c.h.b16 %v477
  %v571 = vunpack.c.l.b16 %v478
  %v572 = vunpack.c.h.b16 %v478
  %v573 = vunpack.c.l.b16 %v479
  %v574 = vunpack.c.h.b16 %v479
  %v575 = vunpack.c.l.b16 %v480
  %v576 = vunpack.c.h.b16 %v480
  %v577 = vunpack.c.l.b16 %v481
  %v578 = vunpack.c.h.b16 %v481
  %v579 = vunpack.c.l.b16 %v482
  %v580 = vunpack.c.h.b16 %v482
  %v581 = vunpack.c.l.b16 %v483
  %v582 = vunpack.c.h.b16 %v483
  %v583 = vunpack.c.l.b16 %v484
  %v584 = vunpack.c.h.b16 %v484
  %v585 = vunpack.c.l.b16 %v485
  %v586 = vunpack.c.h.b16 %v485
  %v587 = vunpack.c.l.b16 %v486
  %v588 = vunpack.c.h.b16 %v486
  %v589 = vunpack.c.l.b16 %v487
  %v590 = vunpack.c.h.b16 %v487
  %v591 = vunpack.c.l.b16 %v488
  %v592 = vunpack.c.h.b16 %v488
  %v593 = vunpack.c.l.b16 %v489
  %v594 = vunpack.c.h.b16 %v489
  %v595 = vunpack.c.l.b16 %v490
  %v596 = vunpack.c.h.b16 %v490
  %v597 = vunpack.c.l.b16 %v491
  %v598 = vunpack.c.h.b16 %v491
  %v599 = vunpack.c.l.b16 %v492
  %v600 = vunpack.c.h.b16 %v492
  %v601 = vpack.c.b16 %v539, %v537
  %v602 = vpack.c.b16 %v540, %v538
  %v603 = vpack.c.b16 %v543, %v541
  %v604 = vpack.c.b16 %v544, %v542
  %v605 = vpack.c.b16 %v547, %v545
  %v606 = vpack.c.b16 %v548, %v546
  %v607 = vpack.c.b16 %v551, %v549
  %v608 = vpack.c.b16 %v552, %v550
  %v609 = vpack.c.b16 %v555, %v553
  %v610 = vpack.c.b16 %v556, %v554
  %v611 = vpack.c.b16 %v559, %v557
  %v612 = vpack.c.b16 %v560, %v558
  %v613 = vpack.c.b16 %v563, %v561
  %v614 = vpack.c.b16 %v564, %v562
  %v615 = vpack.c.b16 %v567, %v565
  %v616 = vpack.c.b16 %v568, %v566
  %v617 = vpack.c.b16 %v571, %v569
  %v618 = vpack.c.b16 %v572, %v570
  %v619 = vpack.c.b16 %v575, %v573
  %v620 = vpack.c.b16 %v576, %v574
  %v621 = vpack.c.b16 %v579, %v577
  %v622 = vpack.c.b16 %v580, %v578
  %v623 = vpack.c.b16 %v583, %v581
  %v624 = vpack.c.b16 %v584, %v582
  %v625 = vpack.c.b16 %v587, %v585
  %v626 = vpack.c.b16 %v588, %v586
  %v627 = vpack.c.b16 %v591, %v589
  %v628 = vpack.c.b16 %v592, %v590
  %v629 = vpack.c.b16 %v595, %v593
  %v630 = vpack.c.b16 %v596, %v594
  %v631 = vpack.c.b16 %v599, %v597
  %v632 = vpack.c.b16 %v600, %v598
  %665 = vmatprep.subr.bf16.mxu0 %v602
  %666 = vmatpush1.bf16.msra.mxu0 %v601
  %667 = vmatprep.subr.bf16.mxu0 %v604
  %668 = vmatpush1.bf16.msra.mxu0 %v603
  %669 = vmatprep.subr.bf16.mxu0 %v606
  %670 = vmatpush1.bf16.msra.mxu0 %v605
  %671 = vmatprep.subr.bf16.mxu0 %v608
  %672 = vmatpush1.bf16.msra.mxu0 %v607
  %673 = vmatprep.subr.bf16.mxu0 %v610
  %674 = vmatpush1.bf16.msra.mxu0 %v609
  %675 = vmatprep.subr.bf16.mxu0 %v612
  %676 = vmatpush1.bf16.msra.mxu0 %v611
  %677 = vmatprep.subr.bf16.mxu0 %v614
  %678 = vmatpush1.bf16.msra.mxu0 %v613
  %679 = vmatprep.subr.bf16.mxu0 %v616
  %680 = vmatpush1.bf16.msra.mxu0 %v615
  %681 = vmatprep.subr.bf16.mxu0 %v618
  %682 = vmatpush1.bf16.msra.mxu0 %v617
  %683 = vmatprep.subr.bf16.mxu0 %v620
  %684 = vmatpush1.bf16.msra.mxu0 %v619
  %685 = vmatprep.subr.bf16.mxu0 %v622
  %686 = vmatpush1.bf16.msra.mxu0 %v621
  %687 = vmatprep.subr.bf16.mxu0 %v624
  %688 = vmatpush1.bf16.msra.mxu0 %v623
  %689 = vmatprep.subr.bf16.mxu0 %v626
  %690 = vmatpush1.bf16.msra.mxu0 %v625
  %691 = vmatprep.subr.bf16.mxu0 %v628
  %692 = vmatpush1.bf16.msra.mxu0 %v627
  %693 = vmatprep.subr.bf16.mxu0 %v630
  %694 = vmatpush1.bf16.msra.mxu0 %v629
  %695 = vmatprep.subr.bf16.mxu0 %v632
  %696 = vmatpush1.bf16.msra.mxu0 %v631
  %697 = vmatprep.mubr.bf16.mxu0 %v460
  %698 = vmatmul.mubr.bf16.gmra.mrb[0].mxu0 %v459
  %v699 = vpop.f32.mrb[0].mxu0
  %v700 = vadd.f32 %v498, %v699
  %v701 = vpop.f32.mrb[0].mxu0
  %v702 = vadd.f32 %v502, %v701
  %v703 = vpop.f32.mrb[0].mxu0
  %v704 = vadd.f32 %v498, %v703
  %v705 = vpop.f32.mrb[0].mxu0
  %v706 = vadd.f32 %v502, %v705
  %707 = vdwg.mxu0
  %v708 = vmax.f32 %v700, 0.0
  %v709 = vmax.f32 %v702, 0.0
  %v710 = vmax.f32 %v704, 0.0
  %v711 = vmax.f32 %v706, 0.0
  %v712 = vpack.c.bf16 %v710, %v708
  %v713 = vpack.c.bf16 %v711, %v709
  %v714 = vld [vmem:[%s7] sm:$0xff]
  %v715 = vld [vmem:[%s7 + $0x8] sm:$0xff]
  %v716 = vld [vmem:[%s7 + $0x10] sm:$0xff]
  %v717 = vld [vmem:[%s7 + $0x18] sm:$0xff]
  %v718 = vld [vmem:[%s7 + $0x20] sm:$0xff]
  %v719 = vld [vmem:[%s7 + $0x28] sm:$0xff]
  %v720 = vld [vmem:[%s7 + $0x30] sm:$0xff]
  %v721 = vld [vmem:[%s7 + $0x38] sm:$0xff]
  %v722 = vld [vmem:[%s7 + $0x40] sm:$0xff]
  %v723 = vld [vmem:[%s7 + $0x48] sm:$0xff]
  %v724 = vld [vmem:[%s7 + $0x50] sm:$0xff]
  %v725 = vld [vmem:[%s7 + $0x58] sm:$0xff]
  %v726 = vld [vmem:[%s7 + $0x60] sm:$0xff]
  %v727 = vld [vmem:[%s7 + $0x68] sm:$0xff]
  %v728 = vld [vmem:[%s7 + $0x70] sm:$0xff]
  %v729 = vld [vmem:[%s7 + $0x78] sm:$0xff]
  %v730 = vld [vmem:[%s7 + $0x80] sm:$0xff]
  %v731 = vld [vmem:[%s7 + $0x88] sm:$0xff]
  %v732 = vld [vmem:[%s7 + $0x90] sm:$0xff]
  %v733 = vld [vmem:[%s7 + $0x98] sm:$0xff]
  %v734 = vld [vmem:[%s7 + $0xa0] sm:$0xff]
  %v735 = vld [vmem:[%s7 + $0xa8] sm:$0xff]
  %v736 = vld [vmem:[%s7 + $0xb0] sm:$0xff]
  %v737 = vld [vmem:[%s7 + $0xb8] sm:$0xff]
  %v738 = vld [vmem:[%s7 + $0xc0] sm:$0xff]
  %v739 = vld [vmem:[%s7 + $0xc8] sm:$0xff]
  %v740 = vld [vmem:[%s7 + $0xd0] sm:$0xff]
  %v741 = vld [vmem:[%s7 + $0xd8] sm:$0xff]
  %v742 = vld [vmem:[%s7 + $0xe0] sm:$0xff]
  %v743 = vld [vmem:[%s7 + $0xe8] sm:$0xff]
  %v744 = vld [vmem:[%s7 + $0xf0] sm:$0xff]
  %v745 = vld [vmem:[%s7 + $0xf8] sm:$0xff]
  %v746 = vld [vmem:[%s8] sm:$0x3]
  %v748 = vlaneseq
  %v749 = vshrl.u32 %v748, 7
  %v750 = vsub.s32 0, %v749
  %v751 = vrot.slane %v746, %v750
  %v752 = vlaneseq
  %v753 = vshrl.u32 %v752, 7
  %v754 = vsub.s32 1, %v753
  %v755 = vrot.slane %v746, %v754
  %v790 = vunpack.c.l.b16 %v714
  %v791 = vunpack.c.h.b16 %v714
  %v792 = vunpack.c.l.b16 %v715
  %v793 = vunpack.c.h.b16 %v715
  %v794 = vunpack.c.l.b16 %v716
  %v795 = vunpack.c.h.b16 %v716
  %v796 = vunpack.c.l.b16 %v717
  %v797 = vunpack.c.h.b16 %v717
  %v798 = vunpack.c.l.b16 %v718
  %v799 = vunpack.c.h.b16 %v718
  %v800 = vunpack.c.l.b16 %v719
  %v801 = vunpack.c.h.b16 %v719
  %v802 = vunpack.c.l.b16 %v720
  %v803 = vunpack.c.h.b16 %v720
  %v804 = vunpack.c.l.b16 %v721
  %v805 = vunpack.c.h.b16 %v721
  %v806 = vunpack.c.l.b16 %v722
  %v807 = vunpack.c.h.b16 %v722
  %v808 = vunpack.c.l.b16 %v723
  %v809 = vunpack.c.h.b16 %v723
  %v810 = vunpack.c.l.b16 %v724
  %v811 = vunpack.c.h.b16 %v724
  %v812 = vunpack.c.l.b16 %v725
  %v813 = vunpack.c.h.b16 %v725
  %v814 = vunpack.c.l.b16 %v726
  %v815 = vunpack.c.h.b16 %v726
  %v816 = vunpack.c.l.b16 %v727
  %v817 = vunpack.c.h.b16 %v727
  %v818 = vunpack.c.l.b16 %v728
  %v819 = vunpack.c.h.b16 %v728
  %v820 = vunpack.c.l.b16 %v729
  %v821 = vunpack.c.h.b16 %v729
  %v822 = vunpack.c.l.b16 %v730
  %v823 = vunpack.c.h.b16 %v730
  %v824 = vunpack.c.l.b16 %v731
  %v825 = vunpack.c.h.b16 %v731
  %v826 = vunpack.c.l.b16 %v732
  %v827 = vunpack.c.h.b16 %v732
  %v828 = vunpack.c.l.b16 %v733
  %v829 = vunpack.c.h.b16 %v733
  %v830 = vunpack.c.l.b16 %v734
  %v831 = vunpack.c.h.b16 %v734
  %v832 = vunpack.c.l.b16 %v735
  %v833 = vunpack.c.h.b16 %v735
  %v834 = vunpack.c.l.b16 %v736
  %v835 = vunpack.c.h.b16 %v736
  %v836 = vunpack.c.l.b16 %v737
  %v837 = vunpack.c.h.b16 %v737
  %v838 = vunpack.c.l.b16 %v738
  %v839 = vunpack.c.h.b16 %v738
  %v840 = vunpack.c.l.b16 %v739
  %v841 = vunpack.c.h.b16 %v739
  %v842 = vunpack.c.l.b16 %v740
  %v843 = vunpack.c.h.b16 %v740
  %v844 = vunpack.c.l.b16 %v741
  %v845 = vunpack.c.h.b16 %v741
  %v846 = vunpack.c.l.b16 %v742
  %v847 = vunpack.c.h.b16 %v742
  %v848 = vunpack.c.l.b16 %v743
  %v849 = vunpack.c.h.b16 %v743
  %v850 = vunpack.c.l.b16 %v744
  %v851 = vunpack.c.h.b16 %v744
  %v852 = vunpack.c.l.b16 %v745
  %v853 = vunpack.c.h.b16 %v745
  %v854 = vpack.c.b16 %v792, %v790
  %v855 = vpack.c.b16 %v793, %v791
  %v856 = vpack.c.b16 %v796, %v794
  %v857 = vpack.c.b16 %v797, %v795
  %v858 = vpack.c.b16 %v800, %v798
  %v859 = vpack.c.b16 %v801, %v799
  %v860 = vpack.c.b16 %v804, %v802
  %v861 = vpack.c.b16 %v805, %v803
  %v862 = vpack.c.b16 %v808, %v806
  %v863 = vpack.c.b16 %v809, %v807
  %v864 = vpack.c.b16 %v812, %v810
  %v865 = vpack.c.b16 %v813, %v811
  %v866 = vpack.c.b16 %v816, %v814
  %v867 = vpack.c.b16 %v817, %v815
  %v868 = vpack.c.b16 %v820, %v818
  %v869 = vpack.c.b16 %v821, %v819
  %v870 = vpack.c.b16 %v824, %v822
  %v871 = vpack.c.b16 %v825, %v823
  %v872 = vpack.c.b16 %v828, %v826
  %v873 = vpack.c.b16 %v829, %v827
  %v874 = vpack.c.b16 %v832, %v830
  %v875 = vpack.c.b16 %v833, %v831
  %v876 = vpack.c.b16 %v836, %v834
  %v877 = vpack.c.b16 %v837, %v835
  %v878 = vpack.c.b16 %v840, %v838
  %v879 = vpack.c.b16 %v841, %v839
  %v880 = vpack.c.b16 %v844, %v842
  %v881 = vpack.c.b16 %v845, %v843
  %v882 = vpack.c.b16 %v848, %v846
  %v883 = vpack.c.b16 %v849, %v847
  %v884 = vpack.c.b16 %v852, %v850
  %v885 = vpack.c.b16 %v853, %v851
  %918 = vmatprep.subr.bf16.mxu0 %v855
  %919 = vmatpush1.bf16.msra.mxu0 %v854
  %920 = vmatprep.subr.bf16.mxu0 %v857
  %921 = vmatpush1.bf16.msra.mxu0 %v856
  %922 = vmatprep.subr.bf16.mxu0 %v859
  %923 = vmatpush1.bf16.msra.mxu0 %v858
  %924 = vmatprep.subr.bf16.mxu0 %v861
  %925 = vmatpush1.bf16.msra.mxu0 %v860
  %926 = vmatprep.subr.bf16.mxu0 %v863
  %927 = vmatpush1.bf16.msra.mxu0 %v862
  %928 = vmatprep.subr.bf16.mxu0 %v865
  %929 = vmatpush1.bf16.msra.mxu0 %v864
  %930 = vmatprep.subr.bf16.mxu0 %v867
  %931 = vmatpush1.bf16.msra.mxu0 %v866
  %932 = vmatprep.subr.bf16.mxu0 %v869
  %933 = vmatpush1.bf16.msra.mxu0 %v868
  %934 = vmatprep.subr.bf16.mxu0 %v871
  %935 = vmatpush1.bf16.msra.mxu0 %v870
  %936 = vmatprep.subr.bf16.mxu0 %v873
  %937 = vmatpush1.bf16.msra.mxu0 %v872
  %938 = vmatprep.subr.bf16.mxu0 %v875
  %939 = vmatpush1.bf16.msra.mxu0 %v874
  %940 = vmatprep.subr.bf16.mxu0 %v877
  %941 = vmatpush1.bf16.msra.mxu0 %v876
  %942 = vmatprep.subr.bf16.mxu0 %v879
  %943 = vmatpush1.bf16.msra.mxu0 %v878
  %944 = vmatprep.subr.bf16.mxu0 %v881
  %945 = vmatpush1.bf16.msra.mxu0 %v880
  %946 = vmatprep.subr.bf16.mxu0 %v883
  %947 = vmatpush1.bf16.msra.mxu0 %v882
  %948 = vmatprep.subr.bf16.mxu0 %v885
  %949 = vmatpush1.bf16.msra.mxu0 %v884
  %950 = vmatprep.mubr.bf16.mxu0 %v713
  %951 = vmatmul.mubr.bf16.gmra.mrb[0].mxu0 %v712
  %v952 = vpop.f32.mrb[0].mxu0
  %v953 = vadd.f32 %v751, %v952
  %v954 = vpop.f32.mrb[0].mxu0
  %v955 = vadd.f32 %v755, %v954
  %v956 = vpop.f32.mrb[0].mxu0
  %v957 = vadd.f32 %v751, %v956
  %v958 = vpop.f32.mrb[0].mxu0
  %v959 = vadd.f32 %v755, %v958
  %960 = vdwg.mxu0
  %v961 = vmax.f32 %v953, 0.0
  %v962 = vmax.f32 %v955, 0.0
  %v963 = vmax.f32 %v957, 0.0
  %v964 = vmax.f32 %v959, 0.0
  %v965 = vpack.c.bf16 %v963, %v961
  %v966 = vpack.c.bf16 %v964, %v962
  %v967 = vld [vmem:[%s9] sm:$0xf]
  %v968 = vld [vmem:[%s9 + $0x4] sm:$0xf]
  %v969 = vld [vmem:[%s9 + $0x8] sm:$0xf]
  %v970 = vld [vmem:[%s9 + $0xc] sm:$0xf]
  %v971 = vld [vmem:[%s9 + $0x10] sm:$0xf]
  %v972 = vld [vmem:[%s9 + $0x14] sm:$0xf]
  %v973 = vld [vmem:[%s9 + $0x18] sm:$0xf]
  %v974 = vld [vmem:[%s9 + $0x1c] sm:$0xf]
  %v975 = vld [vmem:[%s9 + $0x20] sm:$0xf]
  %v976 = vld [vmem:[%s9 + $0x24] sm:$0xf]
  %v977 = vld [vmem:[%s9 + $0x28] sm:$0xf]
  %v978 = vld [vmem:[%s9 + $0x2c] sm:$0xf]
  %v979 = vld [vmem:[%s9 + $0x30] sm:$0xf]
  %v980 = vld [vmem:[%s9 + $0x34] sm:$0xf]
  %v981 = vld [vmem:[%s9 + $0x38] sm:$0xf]
  %v982 = vld [vmem:[%s9 + $0x3c] sm:$0xf]
  %v983 = vld [vmem:[%s9 + $0x40] sm:$0xf]
  %v984 = vld [vmem:[%s9 + $0x44] sm:$0xf]
  %v985 = vld [vmem:[%s9 + $0x48] sm:$0xf]
  %v986 = vld [vmem:[%s9 + $0x4c] sm:$0xf]
  %v987 = vld [vmem:[%s9 + $0x50] sm:$0xf]
  %v988 = vld [vmem:[%s9 + $0x54] sm:$0xf]
  %v989 = vld [vmem:[%s9 + $0x58] sm:$0xf]
  %v990 = vld [vmem:[%s9 + $0x5c] sm:$0xf]
  %v991 = vld [vmem:[%s9 + $0x60] sm:$0xf]
  %v992 = vld [vmem:[%s9 + $0x64] sm:$0xf]
  %v993 = vld [vmem:[%s9 + $0x68] sm:$0xf]
  %v994 = vld [vmem:[%s9 + $0x6c] sm:$0xf]
  %v995 = vld [vmem:[%s9 + $0x70] sm:$0xf]
  %v996 = vld [vmem:[%s9 + $0x74] sm:$0xf]
  %v997 = vld [vmem:[%s9 + $0x78] sm:$0xf]
  %v998 = vld [vmem:[%s9 + $0x7c] sm:$0xf]
  %v999 = vld [vmem:[%s10] sm:$0x1]
  %v1001 = vlaneseq
  %v1002 = vshrl.u32 %v1001, 7
  %v1003 = vsub.s32 0, %v1002
  %v1004 = vrot.slane %v999, %v1003
  %v1038 = vunpack.c.l.b16 %v967
  %v1039 = vunpack.c.l.b16 %v968
  %v1040 = vunpack.c.l.b16 %v969
  %v1041 = vunpack.c.l.b16 %v970
  %v1042 = vunpack.c.l.b16 %v971
  %v1043 = vunpack.c.l.b16 %v972
  %v1044 = vunpack.c.l.b16 %v973
  %v1045 = vunpack.c.l.b16 %v974
  %v1046 = vunpack.c.l.b16 %v975
  %v1047 = vunpack.c.l.b16 %v976
  %v1048 = vunpack.c.l.b16 %v977
  %v1049 = vunpack.c.l.b16 %v978
  %v1050 = vunpack.c.l.b16 %v979
  %v1051 = vunpack.c.l.b16 %v980
  %v1052 = vunpack.c.l.b16 %v981
  %v1053 = vunpack.c.l.b16 %v982
  %v1054 = vunpack.c.l.b16 %v983
  %v1055 = vunpack.c.l.b16 %v984
  %v1056 = vunpack.c.l.b16 %v985
  %v1057 = vunpack.c.l.b16 %v986
  %v1058 = vunpack.c.l.b16 %v987
  %v1059 = vunpack.c.l.b16 %v988
  %v1060 = vunpack.c.l.b16 %v989
  %v1061 = vunpack.c.l.b16 %v990
  %v1062 = vunpack.c.l.b16 %v991
  %v1063 = vunpack.c.l.b16 %v992
  %v1064 = vunpack.c.l.b16 %v993
  %v1065 = vunpack.c.l.b16 %v994
  %v1066 = vunpack.c.l.b16 %v995
  %v1067 = vunpack.c.l.b16 %v996
  %v1068 = vunpack.c.l.b16 %v997
  %v1069 = vunpack.c.l.b16 %v998
  %v1070 = vpack.c.b16 %v1039, %v1038
  %v1071 = vpack.c.b16 %v1041, %v1040
  %v1072 = vpack.c.b16 %v1043, %v1042
  %v1073 = vpack.c.b16 %v1045, %v1044
  %v1074 = vpack.c.b16 %v1047, %v1046
  %v1075 = vpack.c.b16 %v1049, %v1048
  %v1076 = vpack.c.b16 %v1051, %v1050
  %v1077 = vpack.c.b16 %v1053, %v1052
  %v1078 = vpack.c.b16 %v1055, %v1054
  %v1079 = vpack.c.b16 %v1057, %v1056
  %v1080 = vpack.c.b16 %v1059, %v1058
  %v1081 = vpack.c.b16 %v1061, %v1060
  %v1082 = vpack.c.b16 %v1063, %v1062
  %v1083 = vpack.c.b16 %v1065, %v1064
  %v1084 = vpack.c.b16 %v1067, %v1066
  %v1085 = vpack.c.b16 %v1069, %v1068
  %1102 = vmatprep.subr.bf16.mxu0 0
  %1103 = vmatpush1.bf16.msra.mxu0 %v1070
  %1104 = vmatprep.subr.bf16.mxu0 0
  %1105 = vmatpush1.bf16.msra.mxu0 %v1071
  %1106 = vmatprep.subr.bf16.mxu0 0
  %1107 = vmatpush1.bf16.msra.mxu0 %v1072
  %1108 = vmatprep.subr.bf16.mxu0 0
  %1109 = vmatpush1.bf16.msra.mxu0 %v1073
  %1110 = vmatprep.subr.bf16.mxu0 0
  %1111 = vmatpush1.bf16.msra.mxu0 %v1074
  %1112 = vmatprep.subr.bf16.mxu0 0
  %1113 = vmatpush1.bf16.msra.mxu0 %v1075
  %1114 = vmatprep.subr.bf16.mxu0 0
  %1115 = vmatpush1.bf16.msra.mxu0 %v1076
  %1116 = vmatprep.subr.bf16.mxu0 0
  %1117 = vmatpush1.bf16.msra.mxu0 %v1077
  %1118 = vmatprep.subr.bf16.mxu0 0
  %1119 = vmatpush1.bf16.msra.mxu0 %v1078
  %1120 = vmatprep.subr.bf16.mxu0 0
  %1121 = vmatpush1.bf16.msra.mxu0 %v1079
  %1122 = vmatprep.subr.bf16.mxu0 0
  %1123 = vmatpush1.bf16.msra.mxu0 %v1080
  %1124 = vmatprep.subr.bf16.mxu0 0
  %1125 = vmatpush1.bf16.msra.mxu0 %v1081
  %1126 = vmatprep.subr.bf16.mxu0 0
  %1127 = vmatpush1.bf16.msra.mxu0 %v1082
  %1128 = vmatprep.subr.bf16.mxu0 0
  %1129 = vmatpush1.bf16.msra.mxu0 %v1083
  %1130 = vmatprep.subr.bf16.mxu0 0
  %1131 = vmatpush1.bf16.msra.mxu0 %v1084
  %1132 = vmatprep.subr.bf16.mxu0 0
  %1133 = vmatpush1.bf16.msra.mxu0 %v1085
  %1134 = vmatprep.mubr.bf16.mxu0 %v966
  %1135 = vmatmul.mubr.bf16.gmra.mrb[0].mxu0 %v965
  %v1136 = vpop.f32.mrb[0].mxu0
  %v1137 = vadd.f32 %v1004, %v1136
  %v1138 = vpop.f32.mrb[0].mxu0
  %v1139 = vpop.f32.mrb[0].mxu0
  %v1140 = vadd.f32 %v1004, %v1139
  %v1141 = vpop.f32.mrb[0].mxu0
  %1142 = vdwg.mxu0
  %v1143 = vmax.f32 %v1137, 0.0
  %v1144 = vmax.f32 %v1140, 0.0
  %v1145 = vpack.c.bf16 %v1144, %v1143
  %v1146 = vld [vmem:[%s11] sm:$0xf]
  %v1147 = vld [vmem:[%s11 + $0x4] sm:$0xf]
  %v1148 = vld [vmem:[%s11 + $0x8] sm:$0xf]
  %v1149 = vld [vmem:[%s11 + $0xc] sm:$0xf]
  %v1150 = vld [vmem:[%s11 + $0x10] sm:$0xf]
  %v1151 = vld [vmem:[%s11 + $0x14] sm:$0xf]
  %v1152 = vld [vmem:[%s11 + $0x18] sm:$0xf]
  %v1153 = vld [vmem:[%s11 + $0x1c] sm:$0xf]
  %v1154 = vld [vmem:[%s11 + $0x20] sm:$0xf]
  %v1155 = vld [vmem:[%s11 + $0x24] sm:$0xf]
  %v1156 = vld [vmem:[%s11 + $0x28] sm:$0xf]
  %v1157 = vld [vmem:[%s11 + $0x2c] sm:$0xf]
  %v1158 = vld [vmem:[%s11 + $0x30] sm:$0xf]
  %v1159 = vld [vmem:[%s11 + $0x34] sm:$0xf]
  %v1160 = vld [vmem:[%s11 + $0x38] sm:$0xf]
  %v1161 = vld [vmem:[%s11 + $0x3c] sm:$0xf]
  %v1162 = vld [vmem:[%s12] sm:$0x1]
  %v1164 = vlaneseq
  %v1165 = vshrl.u32 %v1164, 7
  %v1166 = vsub.s32 0, %v1165
  %v1167 = vrot.slane %v1162, %v1166
  %v1185 = vunpack.c.l.b16 %v1146
  %v1186 = vunpack.c.l.b16 %v1147
  %v1187 = vunpack.c.l.b16 %v1148
  %v1188 = vunpack.c.l.b16 %v1149
  %v1189 = vunpack.c.l.b16 %v1150
  %v1190 = vunpack.c.l.b16 %v1151
  %v1191 = vunpack.c.l.b16 %v1152
  %v1192 = vunpack.c.l.b16 %v1153
  %v1193 = vunpack.c.l.b16 %v1154
  %v1194 = vunpack.c.l.b16 %v1155
  %v1195 = vunpack.c.l.b16 %v1156
  %v1196 = vunpack.c.l.b16 %v1157
  %v1197 = vunpack.c.l.b16 %v1158
  %v1198 = vunpack.c.l.b16 %v1159
  %v1199 = vunpack.c.l.b16 %v1160
  %v1200 = vunpack.c.l.b16 %v1161
  %v1201 = vpack.c.b16 %v1186, %v1185
  %v1202 = vpack.c.b16 %v1188, %v1187
  %v1203 = vpack.c.b16 %v1190, %v1189
  %v1204 = vpack.c.b16 %v1192, %v1191
  %v1205 = vpack.c.b16 %v1194, %v1193
  %v1206 = vpack.c.b16 %v1196, %v1195
  %v1207 = vpack.c.b16 %v1198, %v1197
  %v1208 = vpack.c.b16 %v1200, %v1199
  %1217 = vmatprep.subr.bf16.mxu0 0
  %1218 = vmatpush1.bf16.msra.mxu0 %v1201
  %1219 = vmatprep.subr.bf16.mxu0 0
  %1220 = vmatpush1.bf16.msra.mxu0 %v1202
  %1221 = vmatprep.subr.bf16.mxu0 0
  %1222 = vmatpush1.bf16.msra.mxu0 %v1203
  %1223 = vmatprep.subr.bf16.mxu0 0
  %1224 = vmatpush1.bf16.msra.mxu0 %v1204
  %1225 = vmatprep.subr.bf16.mxu0 0
  %1226 = vmatpush1.bf16.msra.mxu0 %v1205
  %1227 = vmatprep.subr.bf16.mxu0 0
  %1228 = vmatpush1.bf16.msra.mxu0 %v1206
  %1229 = vmatprep.subr.bf16.mxu0 0
  %1230 = vmatpush1.bf16.msra.mxu0 %v1207
  %1231 = vmatprep.subr.bf16.mxu0 0
  %1232 = vmatpush1.bf16.msra.mxu0 %v1208
  %1233 = vmatprep.subr.bf16.mxu0 0
  %1234 = vmatpush1.bf16.msra.mxu0 0
  %1235 = vmatprep.subr.bf16.mxu0 0
  %1236 = vmatpush1.bf16.msra.mxu0 0
  %1237 = vmatprep.subr.bf16.mxu0 0
  %1238 = vmatpush1.bf16.msra.mxu0 0
  %1239 = vmatprep.subr.bf16.mxu0 0
  %1240 = vmatpush1.bf16.msra.mxu0 0
  %1241 = vmatprep.subr.bf16.mxu0 0
  %1242 = vmatpush1.bf16.msra.mxu0 0
  %1243 = vmatprep.subr.bf16.mxu0 0
  %1244 = vmatpush1.bf16.msra.mxu0 0
  %1245 = vmatprep.subr.bf16.mxu0 0
  %1246 = vmatpush1.bf16.msra.mxu0 0
  %1247 = vmatprep.subr.bf16.mxu0 0
  %1248 = vmatpush1.bf16.msra.mxu0 0
  %1249 = vmatprep.mubr.bf16.mxu0 0
  %1250 = vmatmul.mubr.bf16.gmra.mrb[0].mxu0 %v1145
  %v1251 = vpop.f32.mrb[0].mxu0
  %v1252 = vadd.f32 %v1167, %v1251
  %v1253 = vpop.f32.mrb[0].mxu0
  %v1254 = vpop.f32.mrb[0].mxu0
  %v1255 = vadd.f32 %v1167, %v1254
  %v1256 = vpop.f32.mrb[0].mxu0
  %1257 = vdwg.mxu0
  %vm1258 = vcmask 31744
  %1259 = vst.msk [vmem:[%s13] sm:$0xff] %vm1258, %v1252
  %1260 = vst.msk [vmem:[%s13 + $0x8] sm:$0xff] %vm1258, %v1255
  // Predicated region
  $region54: #{mlp_forward.1} parent=0 // pred_check
    _
  $region55: #{mlp_forward.1} parent=0 // pred_check_branch
    %1262 = sbr.rel (0) target = $region57
  $region56: #{mlp_forward.1} parent=0 // pred_region
    _
  $region57: #{mlp_forward.1} parent=0 // pred_fallthru
    _
  // Predicated region
  $region58: #{mlp_forward.1} parent=0 // pred_check
    _
  $region59: #{mlp_forward.1} parent=0 // pred_check_branch
    %1264 = sbr.rel (0) target = $region61
  $region60: #{mlp_forward.1} parent=0 // pred_region
    _
  $region61: #{mlp_forward.1} parent=0 // pred_fallthru
    _

</llo_original>
